<compile_context>
chip_gen: v7x
topology: tpu7x:2x2x1
jax: 0.10.0
libtpu: 0.0.40
codegen_flags: <defaults>
</compile_context>

<pallas_src>
import functools

import jax
import jax.numpy as jnp
from jax import lax
from jax.experimental import pallas as pl
from jax.experimental.pallas import tpu as pltpu


# ---------------------------------------------------------------------------
# Kernels
# ---------------------------------------------------------------------------

def _hybrid_lif_flat_kernel(x_ref, o_ref, v_ref, *, inv_taus, thetas, tt, sub, n_sub):
    """Flat-slab path. x_ref: (TT, RB, 128); o_ref: (TT, 3, RB, 128); v_ref: (3, RB, 128) f32."""
    # Re-zero membrane state at the start of each row-block's time sweep.
    @pl.when(pl.program_id(1) == 0)
    def _():
        v_ref[...] = jnp.zeros_like(v_ref)

    def process(rows):
        # Membrane state for this sub-tile lives in registers across the unrolled
        # TT time steps (one scratch read + one write per sub-tile per block).
        v = [v_ref[i, rows, :] for i in range(3)]
        for t in range(tt):
            x = x_ref[t, rows, :].astype(jnp.float32)
            for i in range(3):
                h = v[i] + (x - v[i]) * inv_taus[i]        # charge (decay_input=True)
                spike = h >= thetas[i]                      # fire
                o_ref[t, i, rows, :] = spike.astype(o_ref.dtype)
                v[i] = jnp.where(spike, 0.0, h)             # hard reset to v_reset = 0
        for i in range(3):
            v_ref[i, rows, :] = v[i]

    if n_sub == 1:
        process(slice(None))
    else:
        def body(s, carry):
            r0 = pl.multiple_of(s * sub, sub)
            process(pl.ds(r0, sub))
            return carry
        lax.fori_loop(0, n_sub, body, 0)


def _hybrid_lif_direct_kernel(x_ref, o_ref, v_ref, *, inv_taus, thetas, tt, d, n_lb):
    """Direct-layout path (D % 128 == 0).
    x_ref: (TT, BB, D); o_ref: (TT, BB, 3*D) in x.dtype; v_ref: (3, BB, D) f32."""
    @pl.when(pl.program_id(1) == 0)
    def _():
        v_ref[...] = jnp.zeros_like(v_ref)

    def process(c0):
        cols = pl.ds(c0, 128)
        v = [v_ref[i, :, cols] for i in range(3)]
        for t in range(tt):
            x = x_ref[t, :, cols].astype(jnp.float32)
            for i in range(3):
                h = v[i] + (x - v[i]) * inv_taus[i]
                spike = h >= thetas[i]
                # Neuron i's spikes land at lane offset i*D (+ lane-block offset),
                # i.e. directly in the concat([s1, s2, s3], -1) layout.
                o_ref[t, :, pl.ds(i * d + c0, 128)] = spike.astype(o_ref.dtype)
                v[i] = jnp.where(spike, 0.0, h)
        for i in range(3):
            v_ref[i, :, cols] = v[i]

    if n_lb == 1:
        process(0)
    else:
        def body(c, carry):
            process(pl.multiple_of(c * 128, 128))
            return carry
        lax.fori_loop(0, n_lb, body, 0)


# ---------------------------------------------------------------------------
# Wrappers
# ---------------------------------------------------------------------------

def _vmem_capacity_bytes():
    try:
        return int(pltpu.get_tpu_info().vmem_capacity_bytes)
    except Exception:
        return 64 * 1024 * 1024  # conservative (v7x-sized) fallback


def _pick_time_block(t_total, per_step_bytes, budget_bytes, cap=16):
    """Largest divisor of T that fits the pipeline-buffer budget and unroll cap."""
    tt_cap = max(1, min(t_total, cap, max(1, budget_bytes // max(per_step_bytes, 1))))
    for tt in range(int(tt_cap), 0, -1):
        if t_total % tt == 0:
            return tt
    return 1


def _hybrid_lif_flat(x, inv_taus, thetas, budget, vmem_limit):
    """General path: lane-dense (R, 128) feature slab, neuron-major spike slab out."""
    T, M, D = x.shape
    N = M * D
    C = 128
    R = pl.cdiv(N, C)
    in_bytes = x.dtype.itemsize

    xf = x.reshape(T, N)
    n_pad = R * C - N
    if n_pad:
        # TODO(synk): this pad materializes one extra input copy; only hit when
        # prod(non-time dims) % 128 != 0.
        xf = jnp.pad(xf, ((0, 0), (0, n_pad)))
    x2 = xf.reshape(T, R, C)

    if R >= 32:
        RB = min(256, (R // 32) * 32)   # bounded row block, megacore-splittable
        SUB = 32                        # full (32,128) int8 tiles -> unmasked stores
        out_dtype = jnp.int8            # 1 B/spike on the wire (cast fused in wrapper)
    else:
        RB = R
        SUB = R
        out_dtype = jnp.bfloat16        # tiny slab; keep partial-tile stores simple
    NSUB = RB // SUB
    NR = pl.cdiv(R, RB)
    out_bytes = jnp.dtype(out_dtype).itemsize

    per_step = 2 * RB * C * in_bytes + 2 * 3 * RB * C * out_bytes   # double-buffered
    TT = _pick_time_block(T, per_step, budget)
    NT = T // TT

    kernel = functools.partial(
        _hybrid_lif_flat_kernel,
        inv_taus=inv_taus, thetas=thetas, tt=TT, sub=SUB, n_sub=NSUB)

    cost = pl.CostEstimate(
        flops=int(6 * 3 * T * R * C),
        transcendentals=0,
        bytes_accessed=int(T * R * C * in_bytes + T * 3 * R * C * out_bytes))

    out = pl.pallas_call(
        kernel,
        out_shape=jax.ShapeDtypeStruct((T, 3, R, C), out_dtype),
        grid_spec=pltpu.PrefetchScalarGridSpec(
            num_scalar_prefetch=0,
            grid=(NR, NT),
            in_specs=[pl.BlockSpec((TT, RB, C), lambda r, t: (t, r, 0))],
            out_specs=pl.BlockSpec((TT, 3, RB, C), lambda r, t: (t, 0, r, 0)),
            scratch_shapes=[pltpu.VMEM((3, RB, C), jnp.float32)],
        ),
        compiler_params=pltpu.CompilerParams(
            dimension_semantics=("parallel", "arbitrary"),
            vmem_limit_bytes=vmem_limit,
        ),
        cost_estimate=cost,
    )(x2)

    # Single fused slice + transpose + cast pass: (T,3,R,128) spikes -> (T, M, 3*D).
    out = out.reshape(T, 3, R * C)[:, :, :N].reshape(T, 3, M, D)
    out = jnp.transpose(out, (0, 2, 1, 3)).reshape(T, M, 3 * D)
    return out.astype(x.dtype)


def _hybrid_lif_direct(x, inv_taus, thetas, budget, vmem_limit):
    """Fast path for D % 128 == 0: kernel writes the (T, M, 3*D) layout directly."""
    T, M, D = x.shape
    in_bytes = x.dtype.itemsize
    BB = M if M <= 32 else 32           # row block (sublane axis), vreg-friendly
    NB = pl.cdiv(M, BB)
    n_lb = D // 128                     # 128-lane sub-tiles along the feature axis

    per_step = 2 * BB * D * in_bytes + 2 * BB * 3 * D * in_bytes
    TT = _pick_time_block(T, per_step, budget)
    NT = T // TT

    kernel = functools.partial(
        _hybrid_lif_direct_kernel,
        inv_taus=inv_taus, thetas=thetas, tt=TT, d=D, n_lb=n_lb)

    cost = pl.CostEstimate(
        flops=int(6 * 3 * T * M * D),
        transcendentals=0,
        bytes_accessed=int(T * M * D * in_bytes + T * M * 3 * D * in_bytes))

    out = pl.pallas_call(
        kernel,
        out_shape=jax.ShapeDtypeStruct((T, M, 3 * D), x.dtype),
        grid_spec=pltpu.PrefetchScalarGridSpec(
            num_scalar_prefetch=0,
            grid=(NB, NT),
            in_specs=[pl.BlockSpec((TT, BB, D), lambda b, t: (t, b, 0))],
            out_specs=pl.BlockSpec((TT, BB, 3 * D), lambda b, t: (t, b, 0)),
            scratch_shapes=[pltpu.VMEM((3, BB, D), jnp.float32)],
        ),
        compiler_params=pltpu.CompilerParams(
            dimension_semantics=("parallel", "arbitrary"),
            vmem_limit_bytes=vmem_limit,
        ),
        cost_estimate=cost,
    )(x)
    return out


def hybrid_lif(x, tau_list, theta_list):
    """x: (T, ..., D) float -> (T, ..., 3*D) in x.dtype (forward of HybridLIF)."""
    assert len(tau_list) == len(theta_list) == 3
    T = x.shape[0]
    D = x.shape[-1]
    M = 1
    for s in x.shape[1:-1]:
        M *= s

    inv_taus = tuple(float(1.0 / t) for t in tau_list)
    thetas = tuple(float(t) for t in theta_list)

    vmem_cap = _vmem_capacity_bytes()
    budget = vmem_cap // 8          # pipeline-buffer budget: 8 MiB (v7x) / 16 MiB (v5e/v6e)
    vmem_limit = vmem_cap // 2      # 32 MiB (v7x) / 64 MiB (v5e/v6e)

    x3 = x.reshape(T, M, D)
    if D % 128 == 0:
        out = _hybrid_lif_direct(x3, inv_taus, thetas, budget, vmem_limit)
    else:
        out = _hybrid_lif_flat(x3, inv_taus, thetas, budget, vmem_limit)
    return out.reshape(x.shape[:-1] + (3 * D,))


# ---------------------------------------------------------------------------
# Pure-JAX reference (matches the PyTorch module's forward)
# ---------------------------------------------------------------------------

def hybrid_lif_ref(x, tau_list, theta_list):
    feat = x.shape[1:]
    xf = x.astype(jnp.float32)

    def one_lif(tau, theta):
        def step(v, xt):
            h = v + (xt - v) / tau
            s = (h >= theta).astype(jnp.float32)
            v_new = jnp.where(s > 0, 0.0, h)
            return v_new, s

        _, spikes = lax.scan(step, jnp.zeros(feat, jnp.float32), xf)
        return spikes

    outs = [one_lif(float(tau_list[i]), float(theta_list[i])) for i in range(3)]
    return jnp.concatenate(outs, axis=-1).astype(x.dtype)


# ---------------------------------------------------------------------------
# Self-test
# ---------------------------------------------------------------------------

if __name__ == "__main__":
    # Power-of-two taus make multiply-by-1/tau bit-exact vs. the reference divide
    # (for arbitrary taus the threshold compare could flip on a 1-ulp difference).
    tau_list = (2.0, 4.0, 8.0)
    theta_list = (1.0, 0.5, 0.75)

    key = jax.random.PRNGKey(0)
    cases = [
        (8, 2, 32),     # flat path: tiny slab (R=1), bf16 spikes
        (6, 4, 128),    # direct path: D % 128 == 0, no wrapper pass at all
        (8, 100, 96),   # flat path: int8 spikes, 32-row sub-tiles, ragged row block
        (4, 40, 256),   # direct path: batch blocking (BB=32) + 2 lane sub-tiles
    ]
    for idx, (T, B, D) in enumerate(cases):
        key, sk = jax.random.split(key)
        x = 2.0 * jax.random.normal(sk, (T, B, D), dtype=jnp.float32)

        out = jax.block_until_ready(hybrid_lif(x, tau_list, theta_list))
        ref = jax.block_until_ready(hybrid_lif_ref(x, tau_list, theta_list))

        assert out.shape == (T, B, 3 * D), (idx, out.shape)
        assert out.dtype == x.dtype, (idx, out.dtype)
        assert jnp.allclose(out, ref, atol=1e-6, rtol=1e-6), f"mismatch in case {idx}"

    print("KERNEL_OK")
</pallas_src>

<mosaic_0001>
module attributes {stable_mosaic.version = 11 : i64} {
  func.func @_hybrid_lif_flat_kernel(%arg0: i32, %arg1: i32, %arg2: memref<8x1x128xf32, #tpu.memory_space<vmem>>, %arg3: memref<8x3x1x128xbf16, #tpu.memory_space<vmem>>, %arg4: memref<3x1x128xf32, #tpu.memory_space<vmem>>) attributes {dimension_semantics = [#tpu.dimension_semantics<parallel>, #tpu.dimension_semantics<arbitrary>], iteration_bounds = array<i64: 1, 1>, scalar_prefetch = 0 : i64, scratch_operands = 1 : i64, tpu.core_type = #tpu.core_type<tc>, window_params = [{transform_indices = @transform_0, window_bounds = array<i64: 8, 1, 128>}, {transform_indices = @transform_1, window_bounds = array<i64: 8, 3, 1, 128>}]} {
    %c0_i32 = arith.constant 0 : i32
    %0 = arith.cmpi eq, %arg1, %c0_i32 : i32
    %1 = arith.extui %0 : i1 to i32
    %c0_i32_0 = arith.constant 0 : i32
    %2 = arith.cmpi ne, %1, %c0_i32_0 : i32
    scf.if %2 {
      %cst_202 = arith.constant 0.000000e+00 : f32
      %370 = vector.broadcast %cst_202 : f32 to vector<3x1x128xf32>
      %c0_203 = arith.constant 0 : index
      %c0_204 = arith.constant 0 : index
      %c0_205 = arith.constant 0 : index
      %371 = vector.load %arg4[%c0_203, %c0_204, %c0_205] : memref<3x1x128xf32, #tpu.memory_space<vmem>>, vector<3x1x128xf32>
      tpu.vector_store %arg4[%c0_203, %c0_204, %c0_205], %370 {strides = array<i32>} : memref<3x1x128xf32, #tpu.memory_space<vmem>>, vector<3x1x128xf32>,
    } else {
    }
    %c0 = arith.constant 0 : index
    %c0_1 = arith.constant 0 : index
    %c0_2 = arith.constant 0 : index
    %3 = vector.load %arg4[%c0, %c0_1, %c0_2] : memref<3x1x128xf32, #tpu.memory_space<vmem>>, vector<1x1x128xf32>
    %4 = vector.shape_cast %3 : vector<1x1x128xf32> to vector<1x128xf32>
    %c1 = arith.constant 1 : index
    %c0_3 = arith.constant 0 : index
    %c0_4 = arith.constant 0 : index
    %5 = vector.load %arg4[%c1, %c0_3, %c0_4] : memref<3x1x128xf32, #tpu.memory_space<vmem>>, vector<1x1x128xf32>
    %6 = vector.shape_cast %5 : vector<1x1x128xf32> to vector<1x128xf32>
    %c2 = arith.constant 2 : index
    %c0_5 = arith.constant 0 : index
    %c0_6 = arith.constant 0 : index
    %7 = vector.load %arg4[%c2, %c0_5, %c0_6] : memref<3x1x128xf32, #tpu.memory_space<vmem>>, vector<1x1x128xf32>
    %8 = vector.shape_cast %7 : vector<1x1x128xf32> to vector<1x128xf32>
    %c0_7 = arith.constant 0 : index
    %c0_8 = arith.constant 0 : index
    %c0_9 = arith.constant 0 : index
    %9 = vector.load %arg2[%c0_7, %c0_8, %c0_9] : memref<8x1x128xf32, #tpu.memory_space<vmem>>, vector<1x1x128xf32>
    %10 = vector.shape_cast %9 : vector<1x1x128xf32> to vector<1x128xf32>
    %11 = arith.subf %10, %4 : vector<1x128xf32>
    %cst = arith.constant 5.000000e-01 : f32
    %12 = vector.broadcast %cst : f32 to vector<1x128xf32>
    %13 = arith.mulf %11, %12 : vector<1x128xf32>
    %14 = arith.addf %4, %13 : vector<1x128xf32>
    %cst_10 = arith.constant 1.000000e+00 : f32
    %15 = vector.broadcast %cst_10 : f32 to vector<1x128xf32>
    %16 = arith.cmpf oge, %14, %15 : vector<1x128xf32>
    %17 = arith.extui %16 : vector<1x128xi1> to vector<1x128xi32>
    %18 = arith.sitofp %17 : vector<1x128xi32> to vector<1x128xf32>
    %19 = arith.truncf %18 : vector<1x128xf32> to vector<1x128xbf16>
    %c0_11 = arith.constant 0 : index
    %c0_12 = arith.constant 0 : index
    %c0_13 = arith.constant 0 : index
    %c0_14 = arith.constant 0 : index
    %20 = vector.load %arg3[%c0_11, %c0_12, %c0_13, %c0_14] : memref<8x3x1x128xbf16, #tpu.memory_space<vmem>>, vector<1x1x1x128xbf16>
    %21 = vector.shape_cast %20 : vector<1x1x1x128xbf16> to vector<1x128xbf16>
    %22 = vector.shape_cast %19 : vector<1x128xbf16> to vector<1x1x1x128xbf16>
    tpu.vector_store %arg3[%c0_11, %c0_12, %c0_13, %c0_14], %22 {strides = array<i32>} : memref<8x3x1x128xbf16, #tpu.memory_space<vmem>>, vector<1x1x1x128xbf16>,
    %cst_15 = arith.constant 0.000000e+00 : f32
    %23 = vector.broadcast %cst_15 : f32 to vector<1x128xf32>
    %24 = arith.select %16, %23, %14 : vector<1x128xi1>, vector<1x128xf32>
    %25 = arith.subf %10, %6 : vector<1x128xf32>
    %cst_16 = arith.constant 2.500000e-01 : f32
    %26 = vector.broadcast %cst_16 : f32 to vector<1x128xf32>
    %27 = arith.mulf %25, %26 : vector<1x128xf32>
    %28 = arith.addf %6, %27 : vector<1x128xf32>
    %cst_17 = arith.constant 5.000000e-01 : f32
    %29 = vector.broadcast %cst_17 : f32 to vector<1x128xf32>
    %30 = arith.cmpf oge, %28, %29 : vector<1x128xf32>
    %31 = arith.extui %30 : vector<1x128xi1> to vector<1x128xi32>
    %32 = arith.sitofp %31 : vector<1x128xi32> to vector<1x128xf32>
    %33 = arith.truncf %32 : vector<1x128xf32> to vector<1x128xbf16>
    %c0_18 = arith.constant 0 : index
    %c1_19 = arith.constant 1 : index
    %c0_20 = arith.constant 0 : index
    %c0_21 = arith.constant 0 : index
    %34 = vector.load %arg3[%c0_18, %c1_19, %c0_20, %c0_21] : memref<8x3x1x128xbf16, #tpu.memory_space<vmem>>, vector<1x1x1x128xbf16>
    %35 = vector.shape_cast %34 : vector<1x1x1x128xbf16> to vector<1x128xbf16>
    %36 = vector.shape_cast %33 : vector<1x128xbf16> to vector<1x1x1x128xbf16>
    tpu.vector_store %arg3[%c0_18, %c1_19, %c0_20, %c0_21], %36 {strides = array<i32>} : memref<8x3x1x128xbf16, #tpu.memory_space<vmem>>, vector<1x1x1x128xbf16>,
    %cst_22 = arith.constant 0.000000e+00 : f32
    %37 = vector.broadcast %cst_22 : f32 to vector<1x128xf32>
    %38 = arith.select %30, %37, %28 : vector<1x128xi1>, vector<1x128xf32>
    %39 = arith.subf %10, %8 : vector<1x128xf32>
    %cst_23 = arith.constant 1.250000e-01 : f32
    %40 = vector.broadcast %cst_23 : f32 to vector<1x128xf32>
    %41 = arith.mulf %39, %40 : vector<1x128xf32>
    %42 = arith.addf %8, %41 : vector<1x128xf32>
    %cst_24 = arith.constant 7.500000e-01 : f32
    %43 = vector.broadcast %cst_24 : f32 to vector<1x128xf32>
    %44 = arith.cmpf oge, %42, %43 : vector<1x128xf32>
    %45 = arith.extui %44 : vector<1x128xi1> to vector<1x128xi32>
    %46 = arith.sitofp %45 : vector<1x128xi32> to vector<1x128xf32>
    %47 = arith.truncf %46 : vector<1x128xf32> to vector<1x128xbf16>
    %c0_25 = arith.constant 0 : index
    %c2_26 = arith.constant 2 : index
    %c0_27 = arith.constant 0 : index
    %c0_28 = arith.constant 0 : index
    %48 = vector.load %arg3[%c0_25, %c2_26, %c0_27, %c0_28] : memref<8x3x1x128xbf16, #tpu.memory_space<vmem>>, vector<1x1x1x128xbf16>
    %49 = vector.shape_cast %48 : vector<1x1x1x128xbf16> to vector<1x128xbf16>
    %50 = vector.shape_cast %47 : vector<1x128xbf16> to vector<1x1x1x128xbf16>
    tpu.vector_store %arg3[%c0_25, %c2_26, %c0_27, %c0_28], %50 {strides = array<i32>} : memref<8x3x1x128xbf16, #tpu.memory_space<vmem>>, vector<1x1x1x128xbf16>,
    %cst_29 = arith.constant 0.000000e+00 : f32
    %51 = vector.broadcast %cst_29 : f32 to vector<1x128xf32>
    %52 = arith.select %44, %51, %42 : vector<1x128xi1>, vector<1x128xf32>
    %c1_30 = arith.constant 1 : index
    %c0_31 = arith.constant 0 : index
    %c0_32 = arith.constant 0 : index
    %53 = vector.load %arg2[%c1_30, %c0_31, %c0_32] : memref<8x1x128xf32, #tpu.memory_space<vmem>>, vector<1x1x128xf32>
    %54 = vector.shape_cast %53 : vector<1x1x128xf32> to vector<1x128xf32>
    %55 = arith.subf %54, %24 : vector<1x128xf32>
    %cst_33 = arith.constant 5.000000e-01 : f32
    %56 = vector.broadcast %cst_33 : f32 to vector<1x128xf32>
    %57 = arith.mulf %55, %56 : vector<1x128xf32>
    %58 = arith.addf %24, %57 : vector<1x128xf32>
    %cst_34 = arith.constant 1.000000e+00 : f32
    %59 = vector.broadcast %cst_34 : f32 to vector<1x128xf32>
    %60 = arith.cmpf oge, %58, %59 : vector<1x128xf32>
    %61 = arith.extui %60 : vector<1x128xi1> to vector<1x128xi32>
    %62 = arith.sitofp %61 : vector<1x128xi32> to vector<1x128xf32>
    %63 = arith.truncf %62 : vector<1x128xf32> to vector<1x128xbf16>
    %c1_35 = arith.constant 1 : index
    %c0_36 = arith.constant 0 : index
    %c0_37 = arith.constant 0 : index
    %c0_38 = arith.constant 0 : index
    %64 = vector.load %arg3[%c1_35, %c0_36, %c0_37, %c0_38] : memref<8x3x1x128xbf16, #tpu.memory_space<vmem>>, vector<1x1x1x128xbf16>
    %65 = vector.shape_cast %64 : vector<1x1x1x128xbf16> to vector<1x128xbf16>
    %66 = vector.shape_cast %63 : vector<1x128xbf16> to vector<1x1x1x128xbf16>
    tpu.vector_store %arg3[%c1_35, %c0_36, %c0_37, %c0_38], %66 {strides = array<i32>} : memref<8x3x1x128xbf16, #tpu.memory_space<vmem>>, vector<1x1x1x128xbf16>,
    %cst_39 = arith.constant 0.000000e+00 : f32
    %67 = vector.broadcast %cst_39 : f32 to vector<1x128xf32>
    %68 = arith.select %60, %67, %58 : vector<1x128xi1>, vector<1x128xf32>
    %69 = arith.subf %54, %38 : vector<1x128xf32>
    %cst_40 = arith.constant 2.500000e-01 : f32
    %70 = vector.broadcast %cst_40 : f32 to vector<1x128xf32>
    %71 = arith.mulf %69, %70 : vector<1x128xf32>
    %72 = arith.addf %38, %71 : vector<1x128xf32>
    %cst_41 = arith.constant 5.000000e-01 : f32
    %73 = vector.broadcast %cst_41 : f32 to vector<1x128xf32>
    %74 = arith.cmpf oge, %72, %73 : vector<1x128xf32>
    %75 = arith.extui %74 : vector<1x128xi1> to vector<1x128xi32>
    %76 = arith.sitofp %75 : vector<1x128xi32> to vector<1x128xf32>
    %77 = arith.truncf %76 : vector<1x128xf32> to vector<1x128xbf16>
    %c1_42 = arith.constant 1 : index
    %c1_43 = arith.constant 1 : index
    %c0_44 = arith.constant 0 : index
    %c0_45 = arith.constant 0 : index
    %78 = vector.load %arg3[%c1_42, %c1_43, %c0_44, %c0_45] : memref<8x3x1x128xbf16, #tpu.memory_space<vmem>>, vector<1x1x1x128xbf16>
    %79 = vector.shape_cast %78 : vector<1x1x1x128xbf16> to vector<1x128xbf16>
    %80 = vector.shape_cast %77 : vector<1x128xbf16> to vector<1x1x1x128xbf16>
    tpu.vector_store %arg3[%c1_42, %c1_43, %c0_44, %c0_45], %80 {strides = array<i32>} : memref<8x3x1x128xbf16, #tpu.memory_space<vmem>>, vector<1x1x1x128xbf16>,
    %cst_46 = arith.constant 0.000000e+00 : f32
    %81 = vector.broadcast %cst_46 : f32 to vector<1x128xf32>
    %82 = arith.select %74, %81, %72 : vector<1x128xi1>, vector<1x128xf32>
    %83 = arith.subf %54, %52 : vector<1x128xf32>
    %cst_47 = arith.constant 1.250000e-01 : f32
    %84 = vector.broadcast %cst_47 : f32 to vector<1x128xf32>
    %85 = arith.mulf %83, %84 : vector<1x128xf32>
    %86 = arith.addf %52, %85 : vector<1x128xf32>
    %cst_48 = arith.constant 7.500000e-01 : f32
    %87 = vector.broadcast %cst_48 : f32 to vector<1x128xf32>
    %88 = arith.cmpf oge, %86, %87 : vector<1x128xf32>
    %89 = arith.extui %88 : vector<1x128xi1> to vector<1x128xi32>
    %90 = arith.sitofp %89 : vector<1x128xi32> to vector<1x128xf32>
    %91 = arith.truncf %90 : vector<1x128xf32> to vector<1x128xbf16>
    %c1_49 = arith.constant 1 : index
    %c2_50 = arith.constant 2 : index
    %c0_51 = arith.constant 0 : index
    %c0_52 = arith.constant 0 : index
    %92 = vector.load %arg3[%c1_49, %c2_50, %c0_51, %c0_52] : memref<8x3x1x128xbf16, #tpu.memory_space<vmem>>, vector<1x1x1x128xbf16>
    %93 = vector.shape_cast %92 : vector<1x1x1x128xbf16> to vector<1x128xbf16>
    %94 = vector.shape_cast %91 : vector<1x128xbf16> to vector<1x1x1x128xbf16>
    tpu.vector_store %arg3[%c1_49, %c2_50, %c0_51, %c0_52], %94 {strides = array<i32>} : memref<8x3x1x128xbf16, #tpu.memory_space<vmem>>, vector<1x1x1x128xbf16>,
    %cst_53 = arith.constant 0.000000e+00 : f32
    %95 = vector.broadcast %cst_53 : f32 to vector<1x128xf32>
    %96 = arith.select %88, %95, %86 : vector<1x128xi1>, vector<1x128xf32>
    %c2_54 = arith.constant 2 : index
    %c0_55 = arith.constant 0 : index
    %c0_56 = arith.constant 0 : index
    %97 = vector.load %arg2[%c2_54, %c0_55, %c0_56] : memref<8x1x128xf32, #tpu.memory_space<vmem>>, vector<1x1x128xf32>
    %98 = vector.shape_cast %97 : vector<1x1x128xf32> to vector<1x128xf32>
    %99 = arith.subf %98, %68 : vector<1x128xf32>
    %cst_57 = arith.constant 5.000000e-01 : f32
    %100 = vector.broadcast %cst_57 : f32 to vector<1x128xf32>
    %101 = arith.mulf %99, %100 : vector<1x128xf32>
    %102 = arith.addf %68, %101 : vector<1x128xf32>
    %cst_58 = arith.constant 1.000000e+00 : f32
    %103 = vector.broadcast %cst_58 : f32 to vector<1x128xf32>
    %104 = arith.cmpf oge, %102, %103 : vector<1x128xf32>
    %105 = arith.extui %104 : vector<1x128xi1> to vector<1x128xi32>
    %106 = arith.sitofp %105 : vector<1x128xi32> to vector<1x128xf32>
    %107 = arith.truncf %106 : vector<1x128xf32> to vector<1x128xbf16>
    %c2_59 = arith.constant 2 : index
    %c0_60 = arith.constant 0 : index
    %c0_61 = arith.constant 0 : index
    %c0_62 = arith.constant 0 : index
    %108 = vector.load %arg3[%c2_59, %c0_60, %c0_61, %c0_62] : memref<8x3x1x128xbf16, #tpu.memory_space<vmem>>, vector<1x1x1x128xbf16>
    %109 = vector.shape_cast %108 : vector<1x1x1x128xbf16> to vector<1x128xbf16>
    %110 = vector.shape_cast %107 : vector<1x128xbf16> to vector<1x1x1x128xbf16>
    tpu.vector_store %arg3[%c2_59, %c0_60, %c0_61, %c0_62], %110 {strides = array<i32>} : memref<8x3x1x128xbf16, #tpu.memory_space<vmem>>, vector<1x1x1x128xbf16>,
    %cst_63 = arith.constant 0.000000e+00 : f32
    %111 = vector.broadcast %cst_63 : f32 to vector<1x128xf32>
    %112 = arith.select %104, %111, %102 : vector<1x128xi1>, vector<1x128xf32>
    %113 = arith.subf %98, %82 : vector<1x128xf32>
    %cst_64 = arith.constant 2.500000e-01 : f32
    %114 = vector.broadcast %cst_64 : f32 to vector<1x128xf32>
    %115 = arith.mulf %113, %114 : vector<1x128xf32>
    %116 = arith.addf %82, %115 : vector<1x128xf32>
    %cst_65 = arith.constant 5.000000e-01 : f32
    %117 = vector.broadcast %cst_65 : f32 to vector<1x128xf32>
    %118 = arith.cmpf oge, %116, %117 : vector<1x128xf32>
    %119 = arith.extui %118 : vector<1x128xi1> to vector<1x128xi32>
    %120 = arith.sitofp %119 : vector<1x128xi32> to vector<1x128xf32>
    %121 = arith.truncf %120 : vector<1x128xf32> to vector<1x128xbf16>
    %c2_66 = arith.constant 2 : index
    %c1_67 = arith.constant 1 : index
    %c0_68 = arith.constant 0 : index
    %c0_69 = arith.constant 0 : index
    %122 = vector.load %arg3[%c2_66, %c1_67, %c0_68, %c0_69] : memref<8x3x1x128xbf16, #tpu.memory_space<vmem>>, vector<1x1x1x128xbf16>
    %123 = vector.shape_cast %122 : vector<1x1x1x128xbf16> to vector<1x128xbf16>
    %124 = vector.shape_cast %121 : vector<1x128xbf16> to vector<1x1x1x128xbf16>
    tpu.vector_store %arg3[%c2_66, %c1_67, %c0_68, %c0_69], %124 {strides = array<i32>} : memref<8x3x1x128xbf16, #tpu.memory_space<vmem>>, vector<1x1x1x128xbf16>,
    %cst_70 = arith.constant 0.000000e+00 : f32
    %125 = vector.broadcast %cst_70 : f32 to vector<1x128xf32>
    %126 = arith.select %118, %125, %116 : vector<1x128xi1>, vector<1x128xf32>
    %127 = arith.subf %98, %96 : vector<1x128xf32>
    %cst_71 = arith.constant 1.250000e-01 : f32
    %128 = vector.broadcast %cst_71 : f32 to vector<1x128xf32>
    %129 = arith.mulf %127, %128 : vector<1x128xf32>
    %130 = arith.addf %96, %129 : vector<1x128xf32>
    %cst_72 = arith.constant 7.500000e-01 : f32
    %131 = vector.broadcast %cst_72 : f32 to vector<1x128xf32>
    %132 = arith.cmpf oge, %130, %131 : vector<1x128xf32>
    %133 = arith.extui %132 : vector<1x128xi1> to vector<1x128xi32>
    %134 = arith.sitofp %133 : vector<1x128xi32> to vector<1x128xf32>
    %135 = arith.truncf %134 : vector<1x128xf32> to vector<1x128xbf16>
    %c2_73 = arith.constant 2 : index
    %c2_74 = arith.constant 2 : index
    %c0_75 = arith.constant 0 : index
    %c0_76 = arith.constant 0 : index
    %136 = vector.load %arg3[%c2_73, %c2_74, %c0_75, %c0_76] : memref<8x3x1x128xbf16, #tpu.memory_space<vmem>>, vector<1x1x1x128xbf16>
    %137 = vector.shape_cast %136 : vector<1x1x1x128xbf16> to vector<1x128xbf16>
    %138 = vector.shape_cast %135 : vector<1x128xbf16> to vector<1x1x1x128xbf16>
    tpu.vector_store %arg3[%c2_73, %c2_74, %c0_75, %c0_76], %138 {strides = array<i32>} : memref<8x3x1x128xbf16, #tpu.memory_space<vmem>>, vector<1x1x1x128xbf16>,
    %cst_77 = arith.constant 0.000000e+00 : f32
    %139 = vector.broadcast %cst_77 : f32 to vector<1x128xf32>
    %140 = arith.select %132, %139, %130 : vector<1x128xi1>, vector<1x128xf32>
    %c3 = arith.constant 3 : index
    %c0_78 = arith.constant 0 : index
    %c0_79 = arith.constant 0 : index
    %141 = vector.load %arg2[%c3, %c0_78, %c0_79] : memref<8x1x128xf32, #tpu.memory_space<vmem>>, vector<1x1x128xf32>
    %142 = vector.shape_cast %141 : vector<1x1x128xf32> to vector<1x128xf32>
    %143 = arith.subf %142, %112 : vector<1x128xf32>
    %cst_80 = arith.constant 5.000000e-01 : f32
    %144 = vector.broadcast %cst_80 : f32 to vector<1x128xf32>
    %145 = arith.mulf %143, %144 : vector<1x128xf32>
    %146 = arith.addf %112, %145 : vector<1x128xf32>
    %cst_81 = arith.constant 1.000000e+00 : f32
    %147 = vector.broadcast %cst_81 : f32 to vector<1x128xf32>
    %148 = arith.cmpf oge, %146, %147 : vector<1x128xf32>
    %149 = arith.extui %148 : vector<1x128xi1> to vector<1x128xi32>
    %150 = arith.sitofp %149 : vector<1x128xi32> to vector<1x128xf32>
    %151 = arith.truncf %150 : vector<1x128xf32> to vector<1x128xbf16>
    %c3_82 = arith.constant 3 : index
    %c0_83 = arith.constant 0 : index
    %c0_84 = arith.constant 0 : index
    %c0_85 = arith.constant 0 : index
    %152 = vector.load %arg3[%c3_82, %c0_83, %c0_84, %c0_85] : memref<8x3x1x128xbf16, #tpu.memory_space<vmem>>, vector<1x1x1x128xbf16>
    %153 = vector.shape_cast %152 : vector<1x1x1x128xbf16> to vector<1x128xbf16>
    %154 = vector.shape_cast %151 : vector<1x128xbf16> to vector<1x1x1x128xbf16>
    tpu.vector_store %arg3[%c3_82, %c0_83, %c0_84, %c0_85], %154 {strides = array<i32>} : memref<8x3x1x128xbf16, #tpu.memory_space<vmem>>, vector<1x1x1x128xbf16>,
    %cst_86 = arith.constant 0.000000e+00 : f32
    %155 = vector.broadcast %cst_86 : f32 to vector<1x128xf32>
    %156 = arith.select %148, %155, %146 : vector<1x128xi1>, vector<1x128xf32>
    %157 = arith.subf %142, %126 : vector<1x128xf32>
    %cst_87 = arith.constant 2.500000e-01 : f32
    %158 = vector.broadcast %cst_87 : f32 to vector<1x128xf32>
    %159 = arith.mulf %157, %158 : vector<1x128xf32>
    %160 = arith.addf %126, %159 : vector<1x128xf32>
    %cst_88 = arith.constant 5.000000e-01 : f32
    %161 = vector.broadcast %cst_88 : f32 to vector<1x128xf32>
    %162 = arith.cmpf oge, %160, %161 : vector<1x128xf32>
    %163 = arith.extui %162 : vector<1x128xi1> to vector<1x128xi32>
    %164 = arith.sitofp %163 : vector<1x128xi32> to vector<1x128xf32>
    %165 = arith.truncf %164 : vector<1x128xf32> to vector<1x128xbf16>
    %c3_89 = arith.constant 3 : index
    %c1_90 = arith.constant 1 : index
    %c0_91 = arith.constant 0 : index
    %c0_92 = arith.constant 0 : index
    %166 = vector.load %arg3[%c3_89, %c1_90, %c0_91, %c0_92] : memref<8x3x1x128xbf16, #tpu.memory_space<vmem>>, vector<1x1x1x128xbf16>
    %167 = vector.shape_cast %166 : vector<1x1x1x128xbf16> to vector<1x128xbf16>
    %168 = vector.shape_cast %165 : vector<1x128xbf16> to vector<1x1x1x128xbf16>
    tpu.vector_store %arg3[%c3_89, %c1_90, %c0_91, %c0_92], %168 {strides = array<i32>} : memref<8x3x1x128xbf16, #tpu.memory_space<vmem>>, vector<1x1x1x128xbf16>,
    %cst_93 = arith.constant 0.000000e+00 : f32
    %169 = vector.broadcast %cst_93 : f32 to vector<1x128xf32>
    %170 = arith.select %162, %169, %160 : vector<1x128xi1>, vector<1x128xf32>
    %171 = arith.subf %142, %140 : vector<1x128xf32>
    %cst_94 = arith.constant 1.250000e-01 : f32
    %172 = vector.broadcast %cst_94 : f32 to vector<1x128xf32>
    %173 = arith.mulf %171, %172 : vector<1x128xf32>
    %174 = arith.addf %140, %173 : vector<1x128xf32>
    %cst_95 = arith.constant 7.500000e-01 : f32
    %175 = vector.broadcast %cst_95 : f32 to vector<1x128xf32>
    %176 = arith.cmpf oge, %174, %175 : vector<1x128xf32>
    %177 = arith.extui %176 : vector<1x128xi1> to vector<1x128xi32>
    %178 = arith.sitofp %177 : vector<1x128xi32> to vector<1x128xf32>
    %179 = arith.truncf %178 : vector<1x128xf32> to vector<1x128xbf16>
    %c3_96 = arith.constant 3 : index
    %c2_97 = arith.constant 2 : index
    %c0_98 = arith.constant 0 : index
    %c0_99 = arith.constant 0 : index
    %180 = vector.load %arg3[%c3_96, %c2_97, %c0_98, %c0_99] : memref<8x3x1x128xbf16, #tpu.memory_space<vmem>>, vector<1x1x1x128xbf16>
    %181 = vector.shape_cast %180 : vector<1x1x1x128xbf16> to vector<1x128xbf16>
    %182 = vector.shape_cast %179 : vector<1x128xbf16> to vector<1x1x1x128xbf16>
    tpu.vector_store %arg3[%c3_96, %c2_97, %c0_98, %c0_99], %182 {strides = array<i32>} : memref<8x3x1x128xbf16, #tpu.memory_space<vmem>>, vector<1x1x1x128xbf16>,
    %cst_100 = arith.constant 0.000000e+00 : f32
    %183 = vector.broadcast %cst_100 : f32 to vector<1x128xf32>
    %184 = arith.select %176, %183, %174 : vector<1x128xi1>, vector<1x128xf32>
    %c4 = arith.constant 4 : index
    %c0_101 = arith.constant 0 : index
    %c0_102 = arith.constant 0 : index
    %185 = vector.load %arg2[%c4, %c0_101, %c0_102] : memref<8x1x128xf32, #tpu.memory_space<vmem>>, vector<1x1x128xf32>
    %186 = vector.shape_cast %185 : vector<1x1x128xf32> to vector<1x128xf32>
    %187 = arith.subf %186, %156 : vector<1x128xf32>
    %cst_103 = arith.constant 5.000000e-01 : f32
    %188 = vector.broadcast %cst_103 : f32 to vector<1x128xf32>
    %189 = arith.mulf %187, %188 : vector<1x128xf32>
    %190 = arith.addf %156, %189 : vector<1x128xf32>
    %cst_104 = arith.constant 1.000000e+00 : f32
    %191 = vector.broadcast %cst_104 : f32 to vector<1x128xf32>
    %192 = arith.cmpf oge, %190, %191 : vector<1x128xf32>
    %193 = arith.extui %192 : vector<1x128xi1> to vector<1x128xi32>
    %194 = arith.sitofp %193 : vector<1x128xi32> to vector<1x128xf32>
    %195 = arith.truncf %194 : vector<1x128xf32> to vector<1x128xbf16>
    %c4_105 = arith.constant 4 : index
    %c0_106 = arith.constant 0 : index
    %c0_107 = arith.constant 0 : index
    %c0_108 = arith.constant 0 : index
    %196 = vector.load %arg3[%c4_105, %c0_106, %c0_107, %c0_108] : memref<8x3x1x128xbf16, #tpu.memory_space<vmem>>, vector<1x1x1x128xbf16>
    %197 = vector.shape_cast %196 : vector<1x1x1x128xbf16> to vector<1x128xbf16>
    %198 = vector.shape_cast %195 : vector<1x128xbf16> to vector<1x1x1x128xbf16>
    tpu.vector_store %arg3[%c4_105, %c0_106, %c0_107, %c0_108], %198 {strides = array<i32>} : memref<8x3x1x128xbf16, #tpu.memory_space<vmem>>, vector<1x1x1x128xbf16>,
    %cst_109 = arith.constant 0.000000e+00 : f32
    %199 = vector.broadcast %cst_109 : f32 to vector<1x128xf32>
    %200 = arith.select %192, %199, %190 : vector<1x128xi1>, vector<1x128xf32>
    %201 = arith.subf %186, %170 : vector<1x128xf32>
    %cst_110 = arith.constant 2.500000e-01 : f32
    %202 = vector.broadcast %cst_110 : f32 to vector<1x128xf32>
    %203 = arith.mulf %201, %202 : vector<1x128xf32>
    %204 = arith.addf %170, %203 : vector<1x128xf32>
    %cst_111 = arith.constant 5.000000e-01 : f32
    %205 = vector.broadcast %cst_111 : f32 to vector<1x128xf32>
    %206 = arith.cmpf oge, %204, %205 : vector<1x128xf32>
    %207 = arith.extui %206 : vector<1x128xi1> to vector<1x128xi32>
    %208 = arith.sitofp %207 : vector<1x128xi32> to vector<1x128xf32>
    %209 = arith.truncf %208 : vector<1x128xf32> to vector<1x128xbf16>
    %c4_112 = arith.constant 4 : index
    %c1_113 = arith.constant 1 : index
    %c0_114 = arith.constant 0 : index
    %c0_115 = arith.constant 0 : index
    %210 = vector.load %arg3[%c4_112, %c1_113, %c0_114, %c0_115] : memref<8x3x1x128xbf16, #tpu.memory_space<vmem>>, vector<1x1x1x128xbf16>
    %211 = vector.shape_cast %210 : vector<1x1x1x128xbf16> to vector<1x128xbf16>
    %212 = vector.shape_cast %209 : vector<1x128xbf16> to vector<1x1x1x128xbf16>
    tpu.vector_store %arg3[%c4_112, %c1_113, %c0_114, %c0_115], %212 {strides = array<i32>} : memref<8x3x1x128xbf16, #tpu.memory_space<vmem>>, vector<1x1x1x128xbf16>,
    %cst_116 = arith.constant 0.000000e+00 : f32
    %213 = vector.broadcast %cst_116 : f32 to vector<1x128xf32>
    %214 = arith.select %206, %213, %204 : vector<1x128xi1>, vector<1x128xf32>
    %215 = arith.subf %186, %184 : vector<1x128xf32>
    %cst_117 = arith.constant 1.250000e-01 : f32
    %216 = vector.broadcast %cst_117 : f32 to vector<1x128xf32>
    %217 = arith.mulf %215, %216 : vector<1x128xf32>
    %218 = arith.addf %184, %217 : vector<1x128xf32>
    %cst_118 = arith.constant 7.500000e-01 : f32
    %219 = vector.broadcast %cst_118 : f32 to vector<1x128xf32>
    %220 = arith.cmpf oge, %218, %219 : vector<1x128xf32>
    %221 = arith.extui %220 : vector<1x128xi1> to vector<1x128xi32>
    %222 = arith.sitofp %221 : vector<1x128xi32> to vector<1x128xf32>
    %223 = arith.truncf %222 : vector<1x128xf32> to vector<1x128xbf16>
    %c4_119 = arith.constant 4 : index
    %c2_120 = arith.constant 2 : index
    %c0_121 = arith.constant 0 : index
    %c0_122 = arith.constant 0 : index
    %224 = vector.load %arg3[%c4_119, %c2_120, %c0_121, %c0_122] : memref<8x3x1x128xbf16, #tpu.memory_space<vmem>>, vector<1x1x1x128xbf16>
    %225 = vector.shape_cast %224 : vector<1x1x1x128xbf16> to vector<1x128xbf16>
    %226 = vector.shape_cast %223 : vector<1x128xbf16> to vector<1x1x1x128xbf16>
    tpu.vector_store %arg3[%c4_119, %c2_120, %c0_121, %c0_122], %226 {strides = array<i32>} : memref<8x3x1x128xbf16, #tpu.memory_space<vmem>>, vector<1x1x1x128xbf16>,
    %cst_123 = arith.constant 0.000000e+00 : f32
    %227 = vector.broadcast %cst_123 : f32 to vector<1x128xf32>
    %228 = arith.select %220, %227, %218 : vector<1x128xi1>, vector<1x128xf32>
    %c5 = arith.constant 5 : index
    %c0_124 = arith.constant 0 : index
    %c0_125 = arith.constant 0 : index
    %229 = vector.load %arg2[%c5, %c0_124, %c0_125] : memref<8x1x128xf32, #tpu.memory_space<vmem>>, vector<1x1x128xf32>
    %230 = vector.shape_cast %229 : vector<1x1x128xf32> to vector<1x128xf32>
    %231 = arith.subf %230, %200 : vector<1x128xf32>
    %cst_126 = arith.constant 5.000000e-01 : f32
    %232 = vector.broadcast %cst_126 : f32 to vector<1x128xf32>
    %233 = arith.mulf %231, %232 : vector<1x128xf32>
    %234 = arith.addf %200, %233 : vector<1x128xf32>
    %cst_127 = arith.constant 1.000000e+00 : f32
    %235 = vector.broadcast %cst_127 : f32 to vector<1x128xf32>
    %236 = arith.cmpf oge, %234, %235 : vector<1x128xf32>
    %237 = arith.extui %236 : vector<1x128xi1> to vector<1x128xi32>
    %238 = arith.sitofp %237 : vector<1x128xi32> to vector<1x128xf32>
    %239 = arith.truncf %238 : vector<1x128xf32> to vector<1x128xbf16>
    %c5_128 = arith.constant 5 : index
    %c0_129 = arith.constant 0 : index
    %c0_130 = arith.constant 0 : index
    %c0_131 = arith.constant 0 : index
    %240 = vector.load %arg3[%c5_128, %c0_129, %c0_130, %c0_131] : memref<8x3x1x128xbf16, #tpu.memory_space<vmem>>, vector<1x1x1x128xbf16>
    %241 = vector.shape_cast %240 : vector<1x1x1x128xbf16> to vector<1x128xbf16>
    %242 = vector.shape_cast %239 : vector<1x128xbf16> to vector<1x1x1x128xbf16>
    tpu.vector_store %arg3[%c5_128, %c0_129, %c0_130, %c0_131], %242 {strides = array<i32>} : memref<8x3x1x128xbf16, #tpu.memory_space<vmem>>, vector<1x1x1x128xbf16>,
    %cst_132 = arith.constant 0.000000e+00 : f32
    %243 = vector.broadcast %cst_132 : f32 to vector<1x128xf32>
    %244 = arith.select %236, %243, %234 : vector<1x128xi1>, vector<1x128xf32>
    %245 = arith.subf %230, %214 : vector<1x128xf32>
    %cst_133 = arith.constant 2.500000e-01 : f32
    %246 = vector.broadcast %cst_133 : f32 to vector<1x128xf32>
    %247 = arith.mulf %245, %246 : vector<1x128xf32>
    %248 = arith.addf %214, %247 : vector<1x128xf32>
    %cst_134 = arith.constant 5.000000e-01 : f32
    %249 = vector.broadcast %cst_134 : f32 to vector<1x128xf32>
    %250 = arith.cmpf oge, %248, %249 : vector<1x128xf32>
    %251 = arith.extui %250 : vector<1x128xi1> to vector<1x128xi32>
    %252 = arith.sitofp %251 : vector<1x128xi32> to vector<1x128xf32>
    %253 = arith.truncf %252 : vector<1x128xf32> to vector<1x128xbf16>
    %c5_135 = arith.constant 5 : index
    %c1_136 = arith.constant 1 : index
    %c0_137 = arith.constant 0 : index
    %c0_138 = arith.constant 0 : index
    %254 = vector.load %arg3[%c5_135, %c1_136, %c0_137, %c0_138] : memref<8x3x1x128xbf16, #tpu.memory_space<vmem>>, vector<1x1x1x128xbf16>
    %255 = vector.shape_cast %254 : vector<1x1x1x128xbf16> to vector<1x128xbf16>
    %256 = vector.shape_cast %253 : vector<1x128xbf16> to vector<1x1x1x128xbf16>
    tpu.vector_store %arg3[%c5_135, %c1_136, %c0_137, %c0_138], %256 {strides = array<i32>} : memref<8x3x1x128xbf16, #tpu.memory_space<vmem>>, vector<1x1x1x128xbf16>,
    %cst_139 = arith.constant 0.000000e+00 : f32
    %257 = vector.broadcast %cst_139 : f32 to vector<1x128xf32>
    %258 = arith.select %250, %257, %248 : vector<1x128xi1>, vector<1x128xf32>
    %259 = arith.subf %230, %228 : vector<1x128xf32>
    %cst_140 = arith.constant 1.250000e-01 : f32
    %260 = vector.broadcast %cst_140 : f32 to vector<1x128xf32>
    %261 = arith.mulf %259, %260 : vector<1x128xf32>
    %262 = arith.addf %228, %261 : vector<1x128xf32>
    %cst_141 = arith.constant 7.500000e-01 : f32
    %263 = vector.broadcast %cst_141 : f32 to vector<1x128xf32>
    %264 = arith.cmpf oge, %262, %263 : vector<1x128xf32>
    %265 = arith.extui %264 : vector<1x128xi1> to vector<1x128xi32>
    %266 = arith.sitofp %265 : vector<1x128xi32> to vector<1x128xf32>
    %267 = arith.truncf %266 : vector<1x128xf32> to vector<1x128xbf16>
    %c5_142 = arith.constant 5 : index
    %c2_143 = arith.constant 2 : index
    %c0_144 = arith.constant 0 : index
    %c0_145 = arith.constant 0 : index
    %268 = vector.load %arg3[%c5_142, %c2_143, %c0_144, %c0_145] : memref<8x3x1x128xbf16, #tpu.memory_space<vmem>>, vector<1x1x1x128xbf16>
    %269 = vector.shape_cast %268 : vector<1x1x1x128xbf16> to vector<1x128xbf16>
    %270 = vector.shape_cast %267 : vector<1x128xbf16> to vector<1x1x1x128xbf16>
    tpu.vector_store %arg3[%c5_142, %c2_143, %c0_144, %c0_145], %270 {strides = array<i32>} : memref<8x3x1x128xbf16, #tpu.memory_space<vmem>>, vector<1x1x1x128xbf16>,
    %cst_146 = arith.constant 0.000000e+00 : f32
    %271 = vector.broadcast %cst_146 : f32 to vector<1x128xf32>
    %272 = arith.select %264, %271, %262 : vector<1x128xi1>, vector<1x128xf32>
    %c6 = arith.constant 6 : index
    %c0_147 = arith.constant 0 : index
    %c0_148 = arith.constant 0 : index
    %273 = vector.load %arg2[%c6, %c0_147, %c0_148] : memref<8x1x128xf32, #tpu.memory_space<vmem>>, vector<1x1x128xf32>
    %274 = vector.shape_cast %273 : vector<1x1x128xf32> to vector<1x128xf32>
    %275 = arith.subf %274, %244 : vector<1x128xf32>
    %cst_149 = arith.constant 5.000000e-01 : f32
    %276 = vector.broadcast %cst_149 : f32 to vector<1x128xf32>
    %277 = arith.mulf %275, %276 : vector<1x128xf32>
    %278 = arith.addf %244, %277 : vector<1x128xf32>
    %cst_150 = arith.constant 1.000000e+00 : f32
    %279 = vector.broadcast %cst_150 : f32 to vector<1x128xf32>
    %280 = arith.cmpf oge, %278, %279 : vector<1x128xf32>
    %281 = arith.extui %280 : vector<1x128xi1> to vector<1x128xi32>
    %282 = arith.sitofp %281 : vector<1x128xi32> to vector<1x128xf32>
    %283 = arith.truncf %282 : vector<1x128xf32> to vector<1x128xbf16>
    %c6_151 = arith.constant 6 : index
    %c0_152 = arith.constant 0 : index
    %c0_153 = arith.constant 0 : index
    %c0_154 = arith.constant 0 : index
    %284 = vector.load %arg3[%c6_151, %c0_152, %c0_153, %c0_154] : memref<8x3x1x128xbf16, #tpu.memory_space<vmem>>, vector<1x1x1x128xbf16>
    %285 = vector.shape_cast %284 : vector<1x1x1x128xbf16> to vector<1x128xbf16>
    %286 = vector.shape_cast %283 : vector<1x128xbf16> to vector<1x1x1x128xbf16>
    tpu.vector_store %arg3[%c6_151, %c0_152, %c0_153, %c0_154], %286 {strides = array<i32>} : memref<8x3x1x128xbf16, #tpu.memory_space<vmem>>, vector<1x1x1x128xbf16>,
    %cst_155 = arith.constant 0.000000e+00 : f32
    %287 = vector.broadcast %cst_155 : f32 to vector<1x128xf32>
    %288 = arith.select %280, %287, %278 : vector<1x128xi1>, vector<1x128xf32>
    %289 = arith.subf %274, %258 : vector<1x128xf32>
    %cst_156 = arith.constant 2.500000e-01 : f32
    %290 = vector.broadcast %cst_156 : f32 to vector<1x128xf32>
    %291 = arith.mulf %289, %290 : vector<1x128xf32>
    %292 = arith.addf %258, %291 : vector<1x128xf32>
    %cst_157 = arith.constant 5.000000e-01 : f32
    %293 = vector.broadcast %cst_157 : f32 to vector<1x128xf32>
    %294 = arith.cmpf oge, %292, %293 : vector<1x128xf32>
    %295 = arith.extui %294 : vector<1x128xi1> to vector<1x128xi32>
    %296 = arith.sitofp %295 : vector<1x128xi32> to vector<1x128xf32>
    %297 = arith.truncf %296 : vector<1x128xf32> to vector<1x128xbf16>
    %c6_158 = arith.constant 6 : index
    %c1_159 = arith.constant 1 : index
    %c0_160 = arith.constant 0 : index
    %c0_161 = arith.constant 0 : index
    %298 = vector.load %arg3[%c6_158, %c1_159, %c0_160, %c0_161] : memref<8x3x1x128xbf16, #tpu.memory_space<vmem>>, vector<1x1x1x128xbf16>
    %299 = vector.shape_cast %298 : vector<1x1x1x128xbf16> to vector<1x128xbf16>
    %300 = vector.shape_cast %297 : vector<1x128xbf16> to vector<1x1x1x128xbf16>
    tpu.vector_store %arg3[%c6_158, %c1_159, %c0_160, %c0_161], %300 {strides = array<i32>} : memref<8x3x1x128xbf16, #tpu.memory_space<vmem>>, vector<1x1x1x128xbf16>,
    %cst_162 = arith.constant 0.000000e+00 : f32
    %301 = vector.broadcast %cst_162 : f32 to vector<1x128xf32>
    %302 = arith.select %294, %301, %292 : vector<1x128xi1>, vector<1x128xf32>
    %303 = arith.subf %274, %272 : vector<1x128xf32>
    %cst_163 = arith.constant 1.250000e-01 : f32
    %304 = vector.broadcast %cst_163 : f32 to vector<1x128xf32>
    %305 = arith.mulf %303, %304 : vector<1x128xf32>
    %306 = arith.addf %272, %305 : vector<1x128xf32>
    %cst_164 = arith.constant 7.500000e-01 : f32
    %307 = vector.broadcast %cst_164 : f32 to vector<1x128xf32>
    %308 = arith.cmpf oge, %306, %307 : vector<1x128xf32>
    %309 = arith.extui %308 : vector<1x128xi1> to vector<1x128xi32>
    %310 = arith.sitofp %309 : vector<1x128xi32> to vector<1x128xf32>
    %311 = arith.truncf %310 : vector<1x128xf32> to vector<1x128xbf16>
    %c6_165 = arith.constant 6 : index
    %c2_166 = arith.constant 2 : index
    %c0_167 = arith.constant 0 : index
    %c0_168 = arith.constant 0 : index
    %312 = vector.load %arg3[%c6_165, %c2_166, %c0_167, %c0_168] : memref<8x3x1x128xbf16, #tpu.memory_space<vmem>>, vector<1x1x1x128xbf16>
    %313 = vector.shape_cast %312 : vector<1x1x1x128xbf16> to vector<1x128xbf16>
    %314 = vector.shape_cast %311 : vector<1x128xbf16> to vector<1x1x1x128xbf16>
    tpu.vector_store %arg3[%c6_165, %c2_166, %c0_167, %c0_168], %314 {strides = array<i32>} : memref<8x3x1x128xbf16, #tpu.memory_space<vmem>>, vector<1x1x1x128xbf16>,
    %cst_169 = arith.constant 0.000000e+00 : f32
    %315 = vector.broadcast %cst_169 : f32 to vector<1x128xf32>
    %316 = arith.select %308, %315, %306 : vector<1x128xi1>, vector<1x128xf32>
    %c7 = arith.constant 7 : index
    %c0_170 = arith.constant 0 : index
    %c0_171 = arith.constant 0 : index
    %317 = vector.load %arg2[%c7, %c0_170, %c0_171] : memref<8x1x128xf32, #tpu.memory_space<vmem>>, vector<1x1x128xf32>
    %318 = vector.shape_cast %317 : vector<1x1x128xf32> to vector<1x128xf32>
    %319 = arith.subf %318, %288 : vector<1x128xf32>
    %cst_172 = arith.constant 5.000000e-01 : f32
    %320 = vector.broadcast %cst_172 : f32 to vector<1x128xf32>
    %321 = arith.mulf %319, %320 : vector<1x128xf32>
    %322 = arith.addf %288, %321 : vector<1x128xf32>
    %cst_173 = arith.constant 1.000000e+00 : f32
    %323 = vector.broadcast %cst_173 : f32 to vector<1x128xf32>
    %324 = arith.cmpf oge, %322, %323 : vector<1x128xf32>
    %325 = arith.extui %324 : vector<1x128xi1> to vector<1x128xi32>
    %326 = arith.sitofp %325 : vector<1x128xi32> to vector<1x128xf32>
    %327 = arith.truncf %326 : vector<1x128xf32> to vector<1x128xbf16>
    %c7_174 = arith.constant 7 : index
    %c0_175 = arith.constant 0 : index
    %c0_176 = arith.constant 0 : index
    %c0_177 = arith.constant 0 : index
    %328 = vector.load %arg3[%c7_174, %c0_175, %c0_176, %c0_177] : memref<8x3x1x128xbf16, #tpu.memory_space<vmem>>, vector<1x1x1x128xbf16>
    %329 = vector.shape_cast %328 : vector<1x1x1x128xbf16> to vector<1x128xbf16>
    %330 = vector.shape_cast %327 : vector<1x128xbf16> to vector<1x1x1x128xbf16>
    tpu.vector_store %arg3[%c7_174, %c0_175, %c0_176, %c0_177], %330 {strides = array<i32>} : memref<8x3x1x128xbf16, #tpu.memory_space<vmem>>, vector<1x1x1x128xbf16>,
    %cst_178 = arith.constant 0.000000e+00 : f32
    %331 = vector.broadcast %cst_178 : f32 to vector<1x128xf32>
    %332 = arith.select %324, %331, %322 : vector<1x128xi1>, vector<1x128xf32>
    %333 = arith.subf %318, %302 : vector<1x128xf32>
    %cst_179 = arith.constant 2.500000e-01 : f32
    %334 = vector.broadcast %cst_179 : f32 to vector<1x128xf32>
    %335 = arith.mulf %333, %334 : vector<1x128xf32>
    %336 = arith.addf %302, %335 : vector<1x128xf32>
    %cst_180 = arith.constant 5.000000e-01 : f32
    %337 = vector.broadcast %cst_180 : f32 to vector<1x128xf32>
    %338 = arith.cmpf oge, %336, %337 : vector<1x128xf32>
    %339 = arith.extui %338 : vector<1x128xi1> to vector<1x128xi32>
    %340 = arith.sitofp %339 : vector<1x128xi32> to vector<1x128xf32>
    %341 = arith.truncf %340 : vector<1x128xf32> to vector<1x128xbf16>
    %c7_181 = arith.constant 7 : index
    %c1_182 = arith.constant 1 : index
    %c0_183 = arith.constant 0 : index
    %c0_184 = arith.constant 0 : index
    %342 = vector.load %arg3[%c7_181, %c1_182, %c0_183, %c0_184] : memref<8x3x1x128xbf16, #tpu.memory_space<vmem>>, vector<1x1x1x128xbf16>
    %343 = vector.shape_cast %342 : vector<1x1x1x128xbf16> to vector<1x128xbf16>
    %344 = vector.shape_cast %341 : vector<1x128xbf16> to vector<1x1x1x128xbf16>
    tpu.vector_store %arg3[%c7_181, %c1_182, %c0_183, %c0_184], %344 {strides = array<i32>} : memref<8x3x1x128xbf16, #tpu.memory_space<vmem>>, vector<1x1x1x128xbf16>,
    %cst_185 = arith.constant 0.000000e+00 : f32
    %345 = vector.broadcast %cst_185 : f32 to vector<1x128xf32>
    %346 = arith.select %338, %345, %336 : vector<1x128xi1>, vector<1x128xf32>
    %347 = arith.subf %318, %316 : vector<1x128xf32>
    %cst_186 = arith.constant 1.250000e-01 : f32
    %348 = vector.broadcast %cst_186 : f32 to vector<1x128xf32>
    %349 = arith.mulf %347, %348 : vector<1x128xf32>
    %350 = arith.addf %316, %349 : vector<1x128xf32>
    %cst_187 = arith.constant 7.500000e-01 : f32
    %351 = vector.broadcast %cst_187 : f32 to vector<1x128xf32>
    %352 = arith.cmpf oge, %350, %351 : vector<1x128xf32>
    %353 = arith.extui %352 : vector<1x128xi1> to vector<1x128xi32>
    %354 = arith.sitofp %353 : vector<1x128xi32> to vector<1x128xf32>
    %355 = arith.truncf %354 : vector<1x128xf32> to vector<1x128xbf16>
    %c7_188 = arith.constant 7 : index
    %c2_189 = arith.constant 2 : index
    %c0_190 = arith.constant 0 : index
    %c0_191 = arith.constant 0 : index
    %356 = vector.load %arg3[%c7_188, %c2_189, %c0_190, %c0_191] : memref<8x3x1x128xbf16, #tpu.memory_space<vmem>>, vector<1x1x1x128xbf16>
    %357 = vector.shape_cast %356 : vector<1x1x1x128xbf16> to vector<1x128xbf16>
    %358 = vector.shape_cast %355 : vector<1x128xbf16> to vector<1x1x1x128xbf16>
    tpu.vector_store %arg3[%c7_188, %c2_189, %c0_190, %c0_191], %358 {strides = array<i32>} : memref<8x3x1x128xbf16, #tpu.memory_space<vmem>>, vector<1x1x1x128xbf16>,
    %cst_192 = arith.constant 0.000000e+00 : f32
    %359 = vector.broadcast %cst_192 : f32 to vector<1x128xf32>
    %360 = arith.select %352, %359, %350 : vector<1x128xi1>, vector<1x128xf32>
    %c0_193 = arith.constant 0 : index
    %c0_194 = arith.constant 0 : index
    %c0_195 = arith.constant 0 : index
    %361 = vector.load %arg4[%c0_193, %c0_194, %c0_195] : memref<3x1x128xf32, #tpu.memory_space<vmem>>, vector<1x1x128xf32>
    %362 = vector.shape_cast %361 : vector<1x1x128xf32> to vector<1x128xf32>
    %363 = vector.shape_cast %332 : vector<1x128xf32> to vector<1x1x128xf32>
    tpu.vector_store %arg4[%c0_193, %c0_194, %c0_195], %363 {strides = array<i32>} : memref<3x1x128xf32, #tpu.memory_space<vmem>>, vector<1x1x128xf32>,
    %c1_196 = arith.constant 1 : index
    %c0_197 = arith.constant 0 : index
    %c0_198 = arith.constant 0 : index
    %364 = vector.load %arg4[%c1_196, %c0_197, %c0_198] : memref<3x1x128xf32, #tpu.memory_space<vmem>>, vector<1x1x128xf32>
    %365 = vector.shape_cast %364 : vector<1x1x128xf32> to vector<1x128xf32>
    %366 = vector.shape_cast %346 : vector<1x128xf32> to vector<1x1x128xf32>
    tpu.vector_store %arg4[%c1_196, %c0_197, %c0_198], %366 {strides = array<i32>} : memref<3x1x128xf32, #tpu.memory_space<vmem>>, vector<1x1x128xf32>,
    %c2_199 = arith.constant 2 : index
    %c0_200 = arith.constant 0 : index
    %c0_201 = arith.constant 0 : index
    %367 = vector.load %arg4[%c2_199, %c0_200, %c0_201] : memref<3x1x128xf32, #tpu.memory_space<vmem>>, vector<1x1x128xf32>
    %368 = vector.shape_cast %367 : vector<1x1x128xf32> to vector<1x128xf32>
    %369 = vector.shape_cast %360 : vector<1x128xf32> to vector<1x1x128xf32>
    tpu.vector_store %arg4[%c2_199, %c0_200, %c0_201], %369 {strides = array<i32>} : memref<3x1x128xf32, #tpu.memory_space<vmem>>, vector<1x1x128xf32>,
    return
  }
  func.func @transform_0(%arg0: i32, %arg1: i32) -> (i32, i32, i32) {
    %c0_i32 = arith.constant 0 : i32
    %c0_i32_0 = arith.constant 0 : i32
    return %arg1, %arg0, %c0_i32 : i32, i32, i32
  }
  func.func @transform_1(%arg0: i32, %arg1: i32) -> (i32, i32, i32, i32) {
    %c0_i32 = arith.constant 0 : i32
    %c0_i32_0 = arith.constant 0 : i32
    %c0_i32_1 = arith.constant 0 : i32
    return %arg1, %c0_i32, %arg0, %c0_i32_0 : i32, i32, i32, i32
  }
}

</mosaic_0001>

<llo_original>
// kernel: tpu_custom_call.1
$region0: #{tpu_custom_call.1}
  #allocation0 [shape = 'u32[]', space=smem, size = 0x4, offset = 0x4, fixed_abs, tag = 'smem constant byte address 0x4 - core index']
  #allocation1 [shape = 'u32[144,128]{1,0:T(1,128)}', space=vmem, size = 0x12000, scoped, tag = 'internal scratch']
  #allocation2 [shape = 'f32[3,1,128]{2,1,0:T(1,128)}', space=vmem, size = 0x600, scoped, tag = 'scratch operand']
  %s0 = inlined_call_operand.hbm [shape: f32[8,1,128], index: 0, kind: input, shape index: {}]
  %s1 = inlined_call_operand.vmem [shape: bf16[8,3,1,128], index: 1, kind: output, shape index: {}]
  %s2 = sld [smem:[#allocation0]]
  $region22: #{tpu_custom_call.1} parent=0
    _
  %s4 = ssub.s32 1, %s2
  %s5 = scalar_select 0, %s4, %s2
  $region1: #{tpu_custom_call.1} parent=0
    #allocation3 [shape = 'u8[4096]{0}', space=vmem, size = 0x1000, scoped, tag = 'input window, operand 0, single buffered']
    #allocation4 [shape = 's32[1]{0}', space=sflag, size = 0x4, scoped, tag = 'scoped memory for tpu_custom_call.1']
    %6 = vsyncpa [#allocation4], 0
    // Predicated region
    $region2: #{tpu_custom_call.1} parent=1 // pred_check
      _
    $region3: #{tpu_custom_call.1} parent=1 // pred_check_branch
      %8 = sbr.rel (0) target = $region5
    $region4: #{tpu_custom_call.1} parent=1 // pred_region
      %s10 = ssub.s32 128, 128
      %11 = vsyncadd [#allocation4], %s10
      %s12 = sshll.u32 [#allocation3], 4
      %s13 = int_to_ptr.vmem [resolvable:$true] %s12
      %18 = dma.hbm_to_vmem [thread:$0]  %s0, 128, %s13, [#allocation4], 16, 16, 1
    $region5: #{tpu_custom_call.1} parent=1 // pred_fallthru
      _
    // Predicated region
    $region6: #{tpu_custom_call.1} parent=1 // pred_check
      _
    $region7: #{tpu_custom_call.1} parent=1 // pred_check_branch
      %20 = sbr.rel (0) target = $region9
    $region8: #{tpu_custom_call.1} parent=1 // pred_region
      %21 = dma.done [#allocation4], 128
    $region9: #{tpu_custom_call.1} parent=1 // pred_fallthru
      _
    %p22 = scmp.eq.s32.totalorder 0, 0
    // Predicated region
    $region10: #{tpu_custom_call.1} parent=1 // pred_check
      %p23 = pneg %p22
    $region11: #{tpu_custom_call.1} parent=1 // pred_check_branch
      %25 = sbr.rel (%p23) target = $region13
    $region12: #{tpu_custom_call.1} parent=1 // pred_region
      %26 = vst [vmem:[#allocation2] sm:$0x1] 0.0
      %27 = vst [vmem:[#allocation2 + $0x1] sm:$0x1] 0.0
      %28 = vst [vmem:[#allocation2 + $0x2] sm:$0x1] 0.0
    $region13: #{tpu_custom_call.1} parent=1 // pred_fallthru
      _
    %v29 = vld [vmem:[#allocation2] sm:$0x1]
    %s30 = scalar_lea.vmem [#allocation2], 1
    %v31 = vld [vmem:[%s30] sm:$0x1]
    %s32 = scalar_lea.vmem [#allocation2], 2
    %v33 = vld [vmem:[%s32] sm:$0x1]
    %v34 = vld [vmem:[#allocation3] sm:$0x1]
    %v35 = vsub.f32 %v34, %v29
    %v36 = vmul.f32 %v35, 0.5
    %v37 = vadd.f32 %v29, %v36
    %vm38 = vcmp.ge.f32.partialorder %v37, 1.0
    %v39 = vsel %vm38, 1, 0
    %v40 = vcvt.s32.f32 %v39
    %v41 = vpack.c.bf16 %v40, %v40
    %vm42 = vcmask 1040384
    %vm43 = vsmask.f32 256
    %vm44 = vmand %vm42, %vm43
    %v45 = vld [vmem:[%s1] sm:$0x1]
    %v46 = vsel %vm44, %v41, %v45
    %47 = vst [vmem:[%s1] sm:$0x1] %v46
    %v48 = vsel %vm38, 0.0, %v37
    %v49 = vsub.f32 %v34, %v31
    %v50 = vmul.f32 %v49, 0.25
    %v51 = vadd.f32 %v31, %v50
    %vm52 = vcmp.ge.f32.partialorder %v51, 0.5
    %v53 = vsel %vm52, 1, 0
    %v54 = vcvt.s32.f32 %v53
    %v55 = vpack.c.bf16 %v54, %v54
    %s56 = scalar_lea.vmem %s1, 1
    %v57 = vld [vmem:[%s56] sm:$0x1]
    %v58 = vsel %vm44, %v55, %v57
    %59 = vst [vmem:[%s56] sm:$0x1] %v58
    %v60 = vsel %vm52, 0.0, %v51
    %v61 = vsub.f32 %v34, %v33
    %v62 = vmul.f32 %v61, 0.125
    %v63 = vadd.f32 %v33, %v62
    %vm64 = vcmp.ge.f32.partialorder %v63, 0.75
    %v65 = vsel %vm64, 1, 0
    %v66 = vcvt.s32.f32 %v65
    %v67 = vpack.c.bf16 %v66, %v66
    %s68 = scalar_lea.vmem %s1, 2
    %v69 = vld [vmem:[%s68] sm:$0x1]
    %v70 = vsel %vm44, %v67, %v69
    %71 = vst [vmem:[%s68] sm:$0x1] %v70
    %v72 = vsel %vm64, 0.0, %v63
    %s73 = scalar_lea.vmem [#allocation3], 1
    %v74 = vld [vmem:[%s73] sm:$0x1]
    %v75 = vsub.f32 %v74, %v48
    %v76 = vmul.f32 %v75, 0.5
    %v77 = vadd.f32 %v48, %v76
    %vm78 = vcmp.ge.f32.partialorder %v77, 1.0
    %v79 = vsel %vm78, 1, 0
    %v80 = vcvt.s32.f32 %v79
    %v81 = vpack.c.bf16 %v80, %v80
    %s82 = scalar_lea.vmem %s1, 3
    %v83 = vld [vmem:[%s82] sm:$0x1]
    %v84 = vsel %vm44, %v81, %v83
    %85 = vst [vmem:[%s82] sm:$0x1] %v84
    %v86 = vsel %vm78, 0.0, %v77
    %v87 = vsub.f32 %v74, %v60
    %v88 = vmul.f32 %v87, 0.25
    %v89 = vadd.f32 %v60, %v88
    %vm90 = vcmp.ge.f32.partialorder %v89, 0.5
    %v91 = vsel %vm90, 1, 0
    %v92 = vcvt.s32.f32 %v91
    %v93 = vpack.c.bf16 %v92, %v92
    %s94 = scalar_lea.vmem %s1, 4
    %v95 = vld [vmem:[%s94] sm:$0x1]
    %v96 = vsel %vm44, %v93, %v95
    %97 = vst [vmem:[%s94] sm:$0x1] %v96
    %v98 = vsel %vm90, 0.0, %v89
    %v99 = vsub.f32 %v74, %v72
    %v100 = vmul.f32 %v99, 0.125
    %v101 = vadd.f32 %v72, %v100
    %vm102 = vcmp.ge.f32.partialorder %v101, 0.75
    %v103 = vsel %vm102, 1, 0
    %v104 = vcvt.s32.f32 %v103
    %v105 = vpack.c.bf16 %v104, %v104
    %s106 = scalar_lea.vmem %s1, 5
    %v107 = vld [vmem:[%s106] sm:$0x1]
    %v108 = vsel %vm44, %v105, %v107
    %109 = vst [vmem:[%s106] sm:$0x1] %v108
    %v110 = vsel %vm102, 0.0, %v101
    %s111 = scalar_lea.vmem [#allocation3], 2
    %v112 = vld [vmem:[%s111] sm:$0x1]
    %v113 = vsub.f32 %v112, %v86
    %v114 = vmul.f32 %v113, 0.5
    %v115 = vadd.f32 %v86, %v114
    %vm116 = vcmp.ge.f32.partialorder %v115, 1.0
    %v117 = vsel %vm116, 1, 0
    %v118 = vcvt.s32.f32 %v117
    %v119 = vpack.c.bf16 %v118, %v118
    %s120 = scalar_lea.vmem %s1, 6
    %v121 = vld [vmem:[%s120] sm:$0x1]
    %v122 = vsel %vm44, %v119, %v121
    %123 = vst [vmem:[%s120] sm:$0x1] %v122
    %v124 = vsel %vm116, 0.0, %v115
    %v125 = vsub.f32 %v112, %v98
    %v126 = vmul.f32 %v125, 0.25
    %v127 = vadd.f32 %v98, %v126
    %vm128 = vcmp.ge.f32.partialorder %v127, 0.5
    %v129 = vsel %vm128, 1, 0
    %v130 = vcvt.s32.f32 %v129
    %v131 = vpack.c.bf16 %v130, %v130
    %s132 = scalar_lea.vmem %s1, 7
    %v133 = vld [vmem:[%s132] sm:$0x1]
    %v134 = vsel %vm44, %v131, %v133
    %135 = vst [vmem:[%s132] sm:$0x1] %v134
    %v136 = vsel %vm128, 0.0, %v127
    %v137 = vsub.f32 %v112, %v110
    %v138 = vmul.f32 %v137, 0.125
    %v139 = vadd.f32 %v110, %v138
    %vm140 = vcmp.ge.f32.partialorder %v139, 0.75
    %v141 = vsel %vm140, 1, 0
    %v142 = vcvt.s32.f32 %v141
    %v143 = vpack.c.bf16 %v142, %v142
    %s144 = scalar_lea.vmem %s1, 8
    %v145 = vld [vmem:[%s144] sm:$0x1]
    %v146 = vsel %vm44, %v143, %v145
    %147 = vst [vmem:[%s144] sm:$0x1] %v146
    %v148 = vsel %vm140, 0.0, %v139
    %s149 = scalar_lea.vmem [#allocation3], 3
    %v150 = vld [vmem:[%s149] sm:$0x1]
    %v151 = vsub.f32 %v150, %v124
    %v152 = vmul.f32 %v151, 0.5
    %v153 = vadd.f32 %v124, %v152
    %vm154 = vcmp.ge.f32.partialorder %v153, 1.0
    %v155 = vsel %vm154, 1, 0
    %v156 = vcvt.s32.f32 %v155
    %v157 = vpack.c.bf16 %v156, %v156
    %s158 = scalar_lea.vmem %s1, 9
    %v159 = vld [vmem:[%s158] sm:$0x1]
    %v160 = vsel %vm44, %v157, %v159
    %161 = vst [vmem:[%s158] sm:$0x1] %v160
    %v162 = vsel %vm154, 0.0, %v153
    %v163 = vsub.f32 %v150, %v136
    %v164 = vmul.f32 %v163, 0.25
    %v165 = vadd.f32 %v136, %v164
    %vm166 = vcmp.ge.f32.partialorder %v165, 0.5
    %v167 = vsel %vm166, 1, 0
    %v168 = vcvt.s32.f32 %v167
    %v169 = vpack.c.bf16 %v168, %v168
    %s170 = scalar_lea.vmem %s1, 10
    %v171 = vld [vmem:[%s170] sm:$0x1]
    %v172 = vsel %vm44, %v169, %v171
    %173 = vst [vmem:[%s170] sm:$0x1] %v172
    %v174 = vsel %vm166, 0.0, %v165
    %v175 = vsub.f32 %v150, %v148
    %v176 = vmul.f32 %v175, 0.125
    %v177 = vadd.f32 %v148, %v176
    %vm178 = vcmp.ge.f32.partialorder %v177, 0.75
    %v179 = vsel %vm178, 1, 0
    %v180 = vcvt.s32.f32 %v179
    %v181 = vpack.c.bf16 %v180, %v180
    %s182 = scalar_lea.vmem %s1, 11
    %v183 = vld [vmem:[%s182] sm:$0x1]
    %v184 = vsel %vm44, %v181, %v183
    %185 = vst [vmem:[%s182] sm:$0x1] %v184
    %v186 = vsel %vm178, 0.0, %v177
    %s187 = scalar_lea.vmem [#allocation3], 4
    %v188 = vld [vmem:[%s187] sm:$0x1]
    %v189 = vsub.f32 %v188, %v162
    %v190 = vmul.f32 %v189, 0.5
    %v191 = vadd.f32 %v162, %v190
    %vm192 = vcmp.ge.f32.partialorder %v191, 1.0
    %v193 = vsel %vm192, 1, 0
    %v194 = vcvt.s32.f32 %v193
    %v195 = vpack.c.bf16 %v194, %v194
    %s196 = scalar_lea.vmem %s1, 12
    %v197 = vld [vmem:[%s196] sm:$0x1]
    %v198 = vsel %vm44, %v195, %v197
    %199 = vst [vmem:[%s196] sm:$0x1] %v198
    %v200 = vsel %vm192, 0.0, %v191
    %v201 = vsub.f32 %v188, %v174
    %v202 = vmul.f32 %v201, 0.25
    %v203 = vadd.f32 %v174, %v202
    %vm204 = vcmp.ge.f32.partialorder %v203, 0.5
    %v205 = vsel %vm204, 1, 0
    %v206 = vcvt.s32.f32 %v205
    %v207 = vpack.c.bf16 %v206, %v206
    %s208 = scalar_lea.vmem %s1, 13
    %v209 = vld [vmem:[%s208] sm:$0x1]
    %v210 = vsel %vm44, %v207, %v209
    %211 = vst [vmem:[%s208] sm:$0x1] %v210
    %v212 = vsel %vm204, 0.0, %v203
    %v213 = vsub.f32 %v188, %v186
    %v214 = vmul.f32 %v213, 0.125
    %v215 = vadd.f32 %v186, %v214
    %vm216 = vcmp.ge.f32.partialorder %v215, 0.75
    %v217 = vsel %vm216, 1, 0
    %v218 = vcvt.s32.f32 %v217
    %v219 = vpack.c.bf16 %v218, %v218
    %s220 = scalar_lea.vmem %s1, 14
    %v221 = vld [vmem:[%s220] sm:$0x1]
    %v222 = vsel %vm44, %v219, %v221
    %223 = vst [vmem:[%s220] sm:$0x1] %v222
    %v224 = vsel %vm216, 0.0, %v215
    %s225 = scalar_lea.vmem [#allocation3], 5
    %v226 = vld [vmem:[%s225] sm:$0x1]
    %v227 = vsub.f32 %v226, %v200
    %v228 = vmul.f32 %v227, 0.5
    %v229 = vadd.f32 %v200, %v228
    %vm230 = vcmp.ge.f32.partialorder %v229, 1.0
    %v231 = vsel %vm230, 1, 0
    %v232 = vcvt.s32.f32 %v231
    %v233 = vpack.c.bf16 %v232, %v232
    %s234 = scalar_lea.vmem %s1, 15
    %v235 = vld [vmem:[%s234] sm:$0x1]
    %v236 = vsel %vm44, %v233, %v235
    %237 = vst [vmem:[%s234] sm:$0x1] %v236
    %v238 = vsel %vm230, 0.0, %v229
    %v239 = vsub.f32 %v226, %v212
    %v240 = vmul.f32 %v239, 0.25
    %v241 = vadd.f32 %v212, %v240
    %vm242 = vcmp.ge.f32.partialorder %v241, 0.5
    %v243 = vsel %vm242, 1, 0
    %v244 = vcvt.s32.f32 %v243
    %v245 = vpack.c.bf16 %v244, %v244
    %s246 = scalar_lea.vmem %s1, 16
    %v247 = vld [vmem:[%s246] sm:$0x1]
    %v248 = vsel %vm44, %v245, %v247
    %249 = vst [vmem:[%s246] sm:$0x1] %v248
    %v250 = vsel %vm242, 0.0, %v241
    %v251 = vsub.f32 %v226, %v224
    %v252 = vmul.f32 %v251, 0.125
    %v253 = vadd.f32 %v224, %v252
    %vm254 = vcmp.ge.f32.partialorder %v253, 0.75
    %v255 = vsel %vm254, 1, 0
    %v256 = vcvt.s32.f32 %v255
    %v257 = vpack.c.bf16 %v256, %v256
    %s258 = scalar_lea.vmem %s1, 17
    %v259 = vld [vmem:[%s258] sm:$0x1]
    %v260 = vsel %vm44, %v257, %v259
    %261 = vst [vmem:[%s258] sm:$0x1] %v260
    %v262 = vsel %vm254, 0.0, %v253
    %s263 = scalar_lea.vmem [#allocation3], 6
    %v264 = vld [vmem:[%s263] sm:$0x1]
    %v265 = vsub.f32 %v264, %v238
    %v266 = vmul.f32 %v265, 0.5
    %v267 = vadd.f32 %v238, %v266
    %vm268 = vcmp.ge.f32.partialorder %v267, 1.0
    %v269 = vsel %vm268, 1, 0
    %v270 = vcvt.s32.f32 %v269
    %v271 = vpack.c.bf16 %v270, %v270
    %s272 = scalar_lea.vmem %s1, 18
    %v273 = vld [vmem:[%s272] sm:$0x1]
    %v274 = vsel %vm44, %v271, %v273
    %275 = vst [vmem:[%s272] sm:$0x1] %v274
    %v276 = vsel %vm268, 0.0, %v267
    %v277 = vsub.f32 %v264, %v250
    %v278 = vmul.f32 %v277, 0.25
    %v279 = vadd.f32 %v250, %v278
    %vm280 = vcmp.ge.f32.partialorder %v279, 0.5
    %v281 = vsel %vm280, 1, 0
    %v282 = vcvt.s32.f32 %v281
    %v283 = vpack.c.bf16 %v282, %v282
    %s284 = scalar_lea.vmem %s1, 19
    %v285 = vld [vmem:[%s284] sm:$0x1]
    %v286 = vsel %vm44, %v283, %v285
    %287 = vst [vmem:[%s284] sm:$0x1] %v286
    %v288 = vsel %vm280, 0.0, %v279
    %v289 = vsub.f32 %v264, %v262
    %v290 = vmul.f32 %v289, 0.125
    %v291 = vadd.f32 %v262, %v290
    %vm292 = vcmp.ge.f32.partialorder %v291, 0.75
    %v293 = vsel %vm292, 1, 0
    %v294 = vcvt.s32.f32 %v293
    %v295 = vpack.c.bf16 %v294, %v294
    %s296 = scalar_lea.vmem %s1, 20
    %v297 = vld [vmem:[%s296] sm:$0x1]
    %v298 = vsel %vm44, %v295, %v297
    %299 = vst [vmem:[%s296] sm:$0x1] %v298
    %v300 = vsel %vm292, 0.0, %v291
    %s301 = scalar_lea.vmem [#allocation3], 7
    %v302 = vld [vmem:[%s301] sm:$0x1]
    %v303 = vsub.f32 %v302, %v276
    %v304 = vmul.f32 %v303, 0.5
    %v305 = vadd.f32 %v276, %v304
    %vm306 = vcmp.ge.f32.partialorder %v305, 1.0
    %v307 = vsel %vm306, 1, 0
    %v308 = vcvt.s32.f32 %v307
    %v309 = vpack.c.bf16 %v308, %v308
    %s310 = scalar_lea.vmem %s1, 21
    %v311 = vld [vmem:[%s310] sm:$0x1]
    %v312 = vsel %vm44, %v309, %v311
    %313 = vst [vmem:[%s310] sm:$0x1] %v312
    %v314 = vsel %vm306, 0.0, %v305
    %v315 = vsub.f32 %v302, %v288
    %v316 = vmul.f32 %v315, 0.25
    %v317 = vadd.f32 %v288, %v316
    %vm318 = vcmp.ge.f32.partialorder %v317, 0.5
    %v319 = vsel %vm318, 1, 0
    %v320 = vcvt.s32.f32 %v319
    %v321 = vpack.c.bf16 %v320, %v320
    %s322 = scalar_lea.vmem %s1, 22
    %v323 = vld [vmem:[%s322] sm:$0x1]
    %v324 = vsel %vm44, %v321, %v323
    %325 = vst [vmem:[%s322] sm:$0x1] %v324
    %v326 = vsel %vm318, 0.0, %v317
    %v327 = vsub.f32 %v302, %v300
    %v328 = vmul.f32 %v327, 0.125
    %v329 = vadd.f32 %v300, %v328
    %vm330 = vcmp.ge.f32.partialorder %v329, 0.75
    %v331 = vsel %vm330, 1, 0
    %v332 = vcvt.s32.f32 %v331
    %v333 = vpack.c.bf16 %v332, %v332
    %s334 = scalar_lea.vmem %s1, 23
    %v335 = vld [vmem:[%s334] sm:$0x1]
    %v336 = vsel %vm44, %v333, %v335
    %337 = vst [vmem:[%s334] sm:$0x1] %v336
    %v338 = vsel %vm330, 0.0, %v329
    %339 = vst [vmem:[#allocation2] sm:$0x1] %v314
    %340 = vst [vmem:[%s30] sm:$0x1] %v326
    %341 = vst [vmem:[%s32] sm:$0x1] %v338
    // Predicated region
    $region14: #{tpu_custom_call.1} parent=1 // pred_check
      _
    $region15: #{tpu_custom_call.1} parent=1 // pred_check_branch
      %343 = sbr.rel (0) target = $region17
    $region16: #{tpu_custom_call.1} parent=1 // pred_region
      _
    $region17: #{tpu_custom_call.1} parent=1 // pred_fallthru
      _
    // Predicated region
    $region18: #{tpu_custom_call.1} parent=1 // pred_check
      _
    $region19: #{tpu_custom_call.1} parent=1 // pred_check_branch
      %345 = sbr.rel (0) target = $region21
    $region20: #{tpu_custom_call.1} parent=1 // pred_region
      _
    $region21: #{tpu_custom_call.1} parent=1 // pred_fallthru
      _
    %346 = vsyncpa [#allocation4], 1

</llo_original>
